<compile_context>
chip_gen: v7x
topology: tpu7x:2x2x1
jax: 0.10.0
libtpu: 0.0.40
codegen_flags: <defaults>
</compile_context>

<pallas_src>
import functools

import jax
import jax.numpy as jnp
from jax.experimental import pallas as pl
from jax.experimental.pallas import tpu as pltpu


def _fused_mlp_kernel(*refs, n_layers: int):
    # refs = (x_ref, w0_ref, b0_ref, ..., w{L-1}_ref, b{L-1}_ref, o_ref)
    x_ref = refs[0]
    o_ref = refs[-1]
    p_refs = refs[1:-1]

    h = x_ref[...]                          # (TB, IN) f32
    for i in range(n_layers):
        w = p_refs[2 * i][...]              # (IN_i, OUT_i) bf16, VMEM-resident
        b = p_refs[2 * i + 1][...]          # (1, OUT_i) f32
        acc = jnp.dot(h.astype(w.dtype), w, preferred_element_type=jnp.float32)
        acc = acc + b                       # bias in f32
        if i != n_layers - 1:
            acc = jnp.maximum(acc, 0.0)     # ReLU in f32
        h = acc                             # stays on-chip, never stored to HBM
    o_ref[...] = h.astype(o_ref.dtype)


def init_mlp_params(key, layers):
    """PyTorch nn.Linear-style init: weight (out, in), bias (out,), f32."""
    params = []
    for a, b in zip(layers[:-1], layers[1:]):
        key, wk, bk = jax.random.split(key, 3)
        bound = 1.0 / jnp.sqrt(a)
        w = jax.random.uniform(wk, (b, a), jnp.float32, -bound, bound)
        bias = jax.random.uniform(bk, (b,), jnp.float32, -bound, bound)
        params.append((w, bias))
    return params


def prepare_params(params):
    """One-time conversion: (out,in) f32 -> (in,out) bf16 weights, (1,out) f32 biases."""
    prepared = []
    for w, b in params:
        prepared.append((jnp.asarray(w.T, dtype=jnp.bfloat16),
                         b.reshape(1, -1).astype(jnp.float32)))
    return prepared


def _cost_estimate(batch, prepared):
    flops = 0
    bytes_accessed = batch * prepared[0][0].shape[0] * 4      # input (f32)
    for w, b in prepared:
        k, n = w.shape
        flops += 2 * batch * k * n
        bytes_accessed += int(w.size) * 2 + int(b.size) * 4   # bf16 weights, f32 bias
    bytes_accessed += batch * prepared[-1][0].shape[1] * 4    # output (f32)
    return pl.CostEstimate(flops=flops, transcendentals=0,
                           bytes_accessed=bytes_accessed)


def mlp_forward(x, prepared, *, block_b=256):
    """x: (N, C, H, W) f32 -> (N, layers[-1]) f32, matching the PyTorch MLP forward."""
    x2 = x.reshape(x.shape[0], -1)  # torch.flatten(x, 1)
    B, IN = x2.shape
    n_layers = len(prepared)
    OUT = prepared[-1][0].shape[1]

    flat = []
    for w, b in prepared:
        flat += [w, b]
    kernel = functools.partial(_fused_mlp_kernel, n_layers=n_layers)
    cost = _cost_estimate(B, prepared)

    if B <= block_b:
        # Tiny batch: single-block, gridless call. Total footprint (<= ~1.3 MiB of
        # f32 input + ~0.3 MiB bf16 weights) trivially fits VMEM on v5e/v6e/v7x.
        vmem = pl.BlockSpec(memory_space=pltpu.MemorySpace.VMEM)
        return pl.pallas_call(
            kernel,
            out_shape=jax.ShapeDtypeStruct((B, OUT), jnp.float32),
            in_specs=[vmem] * (1 + len(flat)),
            out_specs=vmem,
            cost_estimate=cost,
        )(x2, *flat)

    # Larger batch: tile over the batch axis only; weights/biases stay resident
    # (index_map -> (0,0)); "parallel" lets v7x shard batch tiles across its 2 TCs.
    # Zero-pad the batch up to a multiple of block_b so every grid step is a full
    # (block_b, IN) tile; padded rows are sliced off after the call.
    n_tiles = pl.cdiv(B, block_b)
    B_pad = n_tiles * block_b
    if B_pad != B:
        x2 = jnp.pad(x2, ((0, B_pad - B), (0, 0)))

    in_specs = [pl.BlockSpec((block_b, IN), lambda i: (i, 0))]
    for w, b in prepared:
        in_specs.append(pl.BlockSpec(w.shape, lambda i: (0, 0)))
        in_specs.append(pl.BlockSpec(b.shape, lambda i: (0, 0)))
    out = pl.pallas_call(
        kernel,
        out_shape=jax.ShapeDtypeStruct((B_pad, OUT), jnp.float32),
        grid=(n_tiles,),
        in_specs=in_specs,
        out_specs=pl.BlockSpec((block_b, OUT), lambda i: (i, 0)),
        compiler_params=pltpu.CompilerParams(dimension_semantics=("parallel",)),
        cost_estimate=cost,
    )(x2, *flat)
    if B_pad != B:
        out = out[:B]
    return out


if __name__ == "__main__":
    key = jax.random.PRNGKey(0)
    key, xk = jax.random.split(key)

    # Input: NCHW like PyTorch. Flattened feature dim = 4*16*16 = 1024.
    x = jax.random.normal(xk, (2, 4, 16, 16), jnp.float32)

    layers = [4 * 16 * 16, 128, 64, 16]  # MLP([1024, 128, 64, 16])
    params = init_mlp_params(key, layers)
    prepared = prepare_params(params)     # one-time transpose + bf16 cast

    fwd = jax.jit(lambda xx: mlp_forward(xx, prepared))
    out = jax.block_until_ready(fwd(x))
    assert out.shape == (2, layers[-1])

    # Reference 1: identical bf16-weight math in plain JAX (tight kernel check).
    def ref_bf16(xx):
        h = xx.reshape(xx.shape[0], -1)
        for i, (w, b) in enumerate(prepared):
            h = jnp.dot(h.astype(jnp.bfloat16), w,
                        preferred_element_type=jnp.float32) + b
            if i != len(prepared) - 1:
                h = jnp.maximum(h, 0.0)
        return h

    # Reference 2: full-f32 PyTorch-equivalent math (semantic check, bf16-loose tol).
    def ref_f32(xx):
        h = xx.reshape(xx.shape[0], -1)
        for i, (w, b) in enumerate(params):
            h = h @ w.T + b
            if i != len(params) - 1:
                h = jnp.maximum(h, 0.0)
        return h

    assert jnp.allclose(out, ref_bf16(x), atol=2e-3, rtol=2e-3)
    assert jnp.allclose(out, ref_f32(x), atol=3e-2, rtol=3e-2)

    # Batch-tiled path, divisible batch (grid of 4 tiles of 128 rows).
    key, xk2 = jax.random.split(key)
    xb = jax.random.normal(xk2, (512, 4, 16, 16), jnp.float32)
    out_b = jax.block_until_ready(
        jax.jit(lambda xx: mlp_forward(xx, prepared, block_b=128))(xb))
    assert out_b.shape == (512, layers[-1])
    assert jnp.allclose(out_b, ref_bf16(xb), atol=2e-3, rtol=2e-3)

    # Batch-tiled path, non-divisible batch (exercises the zero-pad + slice path).
    key, xk3 = jax.random.split(key)
    xc = jax.random.normal(xk3, (100, 4, 16, 16), jnp.float32)
    out_c = jax.block_until_ready(
        jax.jit(lambda xx: mlp_forward(xx, prepared, block_b=64))(xc))
    assert out_c.shape == (100, layers[-1])
    assert jnp.allclose(out_c, ref_bf16(xc), atol=2e-3, rtol=2e-3)

    print("KERNEL_OK")
</pallas_src>

<mosaic_0001>
module attributes {stable_mosaic.version = 11 : i64} {
  func.func @_fused_mlp_kernel(%arg0: memref<2x1024xf32, #tpu.memory_space<vmem>>, %arg1: memref<1024x128xbf16, #tpu.memory_space<vmem>>, %arg2: memref<1x128xf32, #tpu.memory_space<vmem>>, %arg3: memref<128x64xbf16, #tpu.memory_space<vmem>>, %arg4: memref<1x64xf32, #tpu.memory_space<vmem>>, %arg5: memref<64x16xbf16, #tpu.memory_space<vmem>>, %arg6: memref<1x16xf32, #tpu.memory_space<vmem>>, %arg7: memref<2x16xf32, #tpu.memory_space<vmem>>) attributes {dimension_semantics = [], scalar_prefetch = 0 : i64, scratch_operands = 0 : i64, tpu.core_type = #tpu.core_type<tc>} {
    %c0 = arith.constant 0 : index
    %c0_0 = arith.constant 0 : index
    %0 = vector.load %arg0[%c0, %c0_0] : memref<2x1024xf32, #tpu.memory_space<vmem>>, vector<2x1024xf32>
    %c0_1 = arith.constant 0 : index
    %c0_2 = arith.constant 0 : index
    %1 = vector.load %arg1[%c0_1, %c0_2] : memref<1024x128xbf16, #tpu.memory_space<vmem>>, vector<1024x128xbf16>
    %c0_3 = arith.constant 0 : index
    %c0_4 = arith.constant 0 : index
    %2 = vector.load %arg2[%c0_3, %c0_4] : memref<1x128xf32, #tpu.memory_space<vmem>>, vector<1x128xf32>
    %3 = arith.truncf %0 : vector<2x1024xf32> to vector<2x1024xbf16>
    %cst = arith.constant dense<0.000000e+00> : vector<2x128xf32>
    %4 = tpu.matmul %3, %1, %cst {dimension_numbers = #tpu.dot_dimension_numbers<[1], [0], [0], [1], [0, 0, 1, 1], [], []>} : vector<2x1024xbf16>, vector<1024x128xbf16>, vector<2x128xf32> -> vector<2x128xf32>
    %5 = vector.broadcast %2 : vector<1x128xf32> to vector<2x128xf32>
    %6 = arith.addf %4, %5 : vector<2x128xf32>
    %cst_5 = arith.constant 0.000000e+00 : f32
    %7 = vector.broadcast %cst_5 : f32 to vector<2x128xf32>
    %8 = arith.maximumf %6, %7 : vector<2x128xf32>
    %c0_6 = arith.constant 0 : index
    %c0_7 = arith.constant 0 : index
    %9 = vector.load %arg3[%c0_6, %c0_7] : memref<128x64xbf16, #tpu.memory_space<vmem>>, vector<128x64xbf16>
    %c0_8 = arith.constant 0 : index
    %c0_9 = arith.constant 0 : index
    %10 = vector.load %arg4[%c0_8, %c0_9] : memref<1x64xf32, #tpu.memory_space<vmem>>, vector<1x64xf32>
    %11 = arith.truncf %8 : vector<2x128xf32> to vector<2x128xbf16>
    %cst_10 = arith.constant dense<0.000000e+00> : vector<2x64xf32>
    %12 = tpu.matmul %11, %9, %cst_10 {dimension_numbers = #tpu.dot_dimension_numbers<[1], [0], [0], [1], [0, 0, 1, 1], [], []>} : vector<2x128xbf16>, vector<128x64xbf16>, vector<2x64xf32> -> vector<2x64xf32>
    %13 = vector.broadcast %10 : vector<1x64xf32> to vector<2x64xf32>
    %14 = arith.addf %12, %13 : vector<2x64xf32>
    %cst_11 = arith.constant 0.000000e+00 : f32
    %15 = vector.broadcast %cst_11 : f32 to vector<2x64xf32>
    %16 = arith.maximumf %14, %15 : vector<2x64xf32>
    %c0_12 = arith.constant 0 : index
    %c0_13 = arith.constant 0 : index
    %17 = vector.load %arg5[%c0_12, %c0_13] : memref<64x16xbf16, #tpu.memory_space<vmem>>, vector<64x16xbf16>
    %c0_14 = arith.constant 0 : index
    %c0_15 = arith.constant 0 : index
    %18 = vector.load %arg6[%c0_14, %c0_15] : memref<1x16xf32, #tpu.memory_space<vmem>>, vector<1x16xf32>
    %19 = arith.truncf %16 : vector<2x64xf32> to vector<2x64xbf16>
    %cst_16 = arith.constant dense<0.000000e+00> : vector<2x16xf32>
    %20 = tpu.matmul %19, %17, %cst_16 {dimension_numbers = #tpu.dot_dimension_numbers<[1], [0], [0], [1], [0, 0, 1, 1], [], []>} : vector<2x64xbf16>, vector<64x16xbf16>, vector<2x16xf32> -> vector<2x16xf32>
    %21 = vector.broadcast %18 : vector<1x16xf32> to vector<2x16xf32>
    %22 = arith.addf %20, %21 : vector<2x16xf32>
    %c0_17 = arith.constant 0 : index
    %c0_18 = arith.constant 0 : index
    %23 = vector.load %arg7[%c0_17, %c0_18] : memref<2x16xf32, #tpu.memory_space<vmem>>, vector<2x16xf32>
    tpu.vector_store %arg7[%c0_17, %c0_18], %22 {strides = array<i32>} : memref<2x16xf32, #tpu.memory_space<vmem>>, vector<2x16xf32>,
    return
  }
}

</mosaic_0001>

<llo_original>
// kernel: _lambda_.1
$region0: #{_lambda_.1}
  #allocation0 [shape = 'u32[]', space=smem, size = 0x4, offset = 0x4, fixed_abs, tag = 'smem constant byte address 0x4 - core index']
  #allocation1 [shape = 'u32[144,128]{1,0:T(1,128)}', space=vmem, size = 0x12000, scoped, tag = 'internal scratch']
  %s0 = inlined_call_operand.vmem [shape: f32[2,1024], index: 0, kind: input, shape index: {}]
  %s1 = inlined_call_operand.hbm [shape: bf16[1024,128], index: 1, kind: input, shape index: {}]
  %s2 = inlined_call_operand.vmem [shape: f32[1,128], index: 2, kind: input, shape index: {}]
  %s3 = inlined_call_operand.vmem [shape: bf16[128,64], index: 3, kind: input, shape index: {}]
  %s4 = inlined_call_operand.vmem [shape: f32[1,64], index: 4, kind: input, shape index: {}]
  %s5 = inlined_call_operand.vmem [shape: bf16[64,16], index: 5, kind: input, shape index: {}]
  %s6 = inlined_call_operand.vmem [shape: f32[1,16], index: 6, kind: input, shape index: {}]
  %s7 = inlined_call_operand.hbm [shape: f32[2,16], index: 7, kind: output, shape index: {}]
  %s8 = sld [smem:[#allocation0]]
  $region42: #{_lambda_.1} parent=0
    _
  %s10 = ssub.s32 1, %s8
  %s11 = scalar_select 0, %s10, %s8
  $region1: #{_lambda_.1} parent=0
    #allocation2 [shape = 'u8[262144]{0}', space=vmem, size = 0x40000, scoped, tag = 'input window, operand 1, single buffered']
    #allocation3 [shape = 's32[1]{0}', space=sflag, size = 0x4, scoped, tag = 'scoped memory for _lambda_.1']
    #allocation4 [shape = 's32[1]{0}', space=sflag, size = 0x4, scoped, tag = 'scoped memory for _lambda_.1']
    #allocation5 [shape = 'u8[1024]{0}', space=vmem, size = 0x400, scoped, tag = 'output window, operand 0, single buffered']
    %12 = vsyncpa [#allocation3], 0
    %13 = vsyncpa [#allocation4], 0
    // Predicated region
    $region2: #{_lambda_.1} parent=1 // pred_check
      _
    $region3: #{_lambda_.1} parent=1 // pred_check_branch
      %15 = sbr.rel (0) target = $region5
    $region4: #{_lambda_.1} parent=1 // pred_region
      _
    $region5: #{_lambda_.1} parent=1 // pred_fallthru
      _
    // Predicated region
    $region6: #{_lambda_.1} parent=1 // pred_check
      _
    $region7: #{_lambda_.1} parent=1 // pred_check_branch
      %17 = sbr.rel (0) target = $region9
    $region8: #{_lambda_.1} parent=1 // pred_region
      %s19 = ssub.s32 8192, 8192
      %20 = vsyncadd [#allocation3], %s19
      %s21 = sshll.u32 [#allocation2], 4
      %s22 = int_to_ptr.vmem [resolvable:$true] %s21
      %27 = dma.hbm_to_vmem [thread:$0]  %s1, 8192, %s22, [#allocation3], 64, 64, 4
    $region9: #{_lambda_.1} parent=1 // pred_fallthru
      _
    // Predicated region
    $region10: #{_lambda_.1} parent=1 // pred_check
      _
    $region11: #{_lambda_.1} parent=1 // pred_check_branch
      %29 = sbr.rel (0) target = $region13
    $region12: #{_lambda_.1} parent=1 // pred_region
      _
    $region13: #{_lambda_.1} parent=1 // pred_fallthru
      _
    // Predicated region
    $region14: #{_lambda_.1} parent=1 // pred_check
      _
    $region15: #{_lambda_.1} parent=1 // pred_check_branch
      %31 = sbr.rel (0) target = $region17
    $region16: #{_lambda_.1} parent=1 // pred_region
      _
    $region17: #{_lambda_.1} parent=1 // pred_fallthru
      _
    // Predicated region
    $region18: #{_lambda_.1} parent=1 // pred_check
      _
    $region19: #{_lambda_.1} parent=1 // pred_check_branch
      %33 = sbr.rel (0) target = $region21
    $region20: #{_lambda_.1} parent=1 // pred_region
      _
    $region21: #{_lambda_.1} parent=1 // pred_fallthru
      _
    // Predicated region
    $region22: #{_lambda_.1} parent=1 // pred_check
      _
    $region23: #{_lambda_.1} parent=1 // pred_check_branch
      %35 = sbr.rel (0) target = $region25
    $region24: #{_lambda_.1} parent=1 // pred_region
      _
    $region25: #{_lambda_.1} parent=1 // pred_fallthru
      _
    // Predicated region
    $region26: #{_lambda_.1} parent=1 // pred_check
      _
    $region27: #{_lambda_.1} parent=1 // pred_check_branch
      %37 = sbr.rel (0) target = $region29
    $region28: #{_lambda_.1} parent=1 // pred_region
      _
    $region29: #{_lambda_.1} parent=1 // pred_fallthru
      _
    // Predicated region
    $region30: #{_lambda_.1} parent=1 // pred_check
      _
    $region31: #{_lambda_.1} parent=1 // pred_check_branch
      %39 = sbr.rel (0) target = $region33
    $region32: #{_lambda_.1} parent=1 // pred_region
      %40 = dma.done [#allocation3], 8192
    $region33: #{_lambda_.1} parent=1 // pred_fallthru
      _
    %v42 = vld [vmem:[%s0] sm:$0xff]
    %v43 = vld [vmem:[%s0 + $0x8] sm:$0xff]
    %v44 = vld [vmem:[#allocation2] sm:$0xf]
    %v45 = vld [vmem:[#allocation2 + $0x4] sm:$0xf]
    %v46 = vld [vmem:[#allocation2 + $0x8] sm:$0xf]
    %v47 = vld [vmem:[#allocation2 + $0xc] sm:$0xf]
    %v48 = vld [vmem:[#allocation2 + $0x10] sm:$0xf]
    %v49 = vld [vmem:[#allocation2 + $0x14] sm:$0xf]
    %v50 = vld [vmem:[#allocation2 + $0x18] sm:$0xf]
    %v51 = vld [vmem:[#allocation2 + $0x1c] sm:$0xf]
    %v52 = vld [vmem:[#allocation2 + $0x20] sm:$0xf]
    %v53 = vld [vmem:[#allocation2 + $0x24] sm:$0xf]
    %v54 = vld [vmem:[#allocation2 + $0x28] sm:$0xf]
    %v55 = vld [vmem:[#allocation2 + $0x2c] sm:$0xf]
    %v56 = vld [vmem:[#allocation2 + $0x30] sm:$0xf]
    %v57 = vld [vmem:[#allocation2 + $0x34] sm:$0xf]
    %v58 = vld [vmem:[#allocation2 + $0x38] sm:$0xf]
    %v59 = vld [vmem:[#allocation2 + $0x3c] sm:$0xf]
    %v60 = vld [vmem:[#allocation2 + $0x40] sm:$0xf]
    %v61 = vld [vmem:[#allocation2 + $0x44] sm:$0xf]
    %v62 = vld [vmem:[#allocation2 + $0x48] sm:$0xf]
    %v63 = vld [vmem:[#allocation2 + $0x4c] sm:$0xf]
    %v64 = vld [vmem:[#allocation2 + $0x50] sm:$0xf]
    %v65 = vld [vmem:[#allocation2 + $0x54] sm:$0xf]
    %v66 = vld [vmem:[#allocation2 + $0x58] sm:$0xf]
    %v67 = vld [vmem:[#allocation2 + $0x5c] sm:$0xf]
    %v68 = vld [vmem:[#allocation2 + $0x60] sm:$0xf]
    %v69 = vld [vmem:[#allocation2 + $0x64] sm:$0xf]
    %v70 = vld [vmem:[#allocation2 + $0x68] sm:$0xf]
    %v71 = vld [vmem:[#allocation2 + $0x6c] sm:$0xf]
    %v72 = vld [vmem:[#allocation2 + $0x70] sm:$0xf]
    %v73 = vld [vmem:[#allocation2 + $0x74] sm:$0xf]
    %v74 = vld [vmem:[#allocation2 + $0x78] sm:$0xf]
    %v75 = vld [vmem:[#allocation2 + $0x7c] sm:$0xf]
    %v76 = vld [vmem:[#allocation2 + $0x80] sm:$0xf]
    %v77 = vld [vmem:[#allocation2 + $0x84] sm:$0xf]
    %v78 = vld [vmem:[#allocation2 + $0x88] sm:$0xf]
    %v79 = vld [vmem:[#allocation2 + $0x8c] sm:$0xf]
    %v80 = vld [vmem:[#allocation2 + $0x90] sm:$0xf]
    %v81 = vld [vmem:[#allocation2 + $0x94] sm:$0xf]
    %v82 = vld [vmem:[#allocation2 + $0x98] sm:$0xf]
    %v83 = vld [vmem:[#allocation2 + $0x9c] sm:$0xf]
    %v84 = vld [vmem:[#allocation2 + $0xa0] sm:$0xf]
    %v85 = vld [vmem:[#allocation2 + $0xa4] sm:$0xf]
    %v86 = vld [vmem:[#allocation2 + $0xa8] sm:$0xf]
    %v87 = vld [vmem:[#allocation2 + $0xac] sm:$0xf]
    %v88 = vld [vmem:[#allocation2 + $0xb0] sm:$0xf]
    %v89 = vld [vmem:[#allocation2 + $0xb4] sm:$0xf]
    %v90 = vld [vmem:[#allocation2 + $0xb8] sm:$0xf]
    %v91 = vld [vmem:[#allocation2 + $0xbc] sm:$0xf]
    %v92 = vld [vmem:[#allocation2 + $0xc0] sm:$0xf]
    %v93 = vld [vmem:[#allocation2 + $0xc4] sm:$0xf]
    %v94 = vld [vmem:[#allocation2 + $0xc8] sm:$0xf]
    %v95 = vld [vmem:[#allocation2 + $0xcc] sm:$0xf]
    %v96 = vld [vmem:[#allocation2 + $0xd0] sm:$0xf]
    %v97 = vld [vmem:[#allocation2 + $0xd4] sm:$0xf]
    %v98 = vld [vmem:[#allocation2 + $0xd8] sm:$0xf]
    %v99 = vld [vmem:[#allocation2 + $0xdc] sm:$0xf]
    %v100 = vld [vmem:[#allocation2 + $0xe0] sm:$0xf]
    %v101 = vld [vmem:[#allocation2 + $0xe4] sm:$0xf]
    %v102 = vld [vmem:[#allocation2 + $0xe8] sm:$0xf]
    %v103 = vld [vmem:[#allocation2 + $0xec] sm:$0xf]
    %v104 = vld [vmem:[#allocation2 + $0xf0] sm:$0xf]
    %v105 = vld [vmem:[#allocation2 + $0xf4] sm:$0xf]
    %v106 = vld [vmem:[#allocation2 + $0xf8] sm:$0xf]
    %v107 = vld [vmem:[#allocation2 + $0xfc] sm:$0xf]
    %v108 = vld [vmem:[#allocation2 + $0x100] sm:$0xf]
    %v109 = vld [vmem:[#allocation2 + $0x104] sm:$0xf]
    %v110 = vld [vmem:[#allocation2 + $0x108] sm:$0xf]
    %v111 = vld [vmem:[#allocation2 + $0x10c] sm:$0xf]
    %v112 = vld [vmem:[#allocation2 + $0x110] sm:$0xf]
    %v113 = vld [vmem:[#allocation2 + $0x114] sm:$0xf]
    %v114 = vld [vmem:[#allocation2 + $0x118] sm:$0xf]
    %v115 = vld [vmem:[#allocation2 + $0x11c] sm:$0xf]
    %v116 = vld [vmem:[#allocation2 + $0x120] sm:$0xf]
    %v117 = vld [vmem:[#allocation2 + $0x124] sm:$0xf]
    %v118 = vld [vmem:[#allocation2 + $0x128] sm:$0xf]
    %v119 = vld [vmem:[#allocation2 + $0x12c] sm:$0xf]
    %v120 = vld [vmem:[#allocation2 + $0x130] sm:$0xf]
    %v121 = vld [vmem:[#allocation2 + $0x134] sm:$0xf]
    %v122 = vld [vmem:[#allocation2 + $0x138] sm:$0xf]
    %v123 = vld [vmem:[#allocation2 + $0x13c] sm:$0xf]
    %v124 = vld [vmem:[#allocation2 + $0x140] sm:$0xf]
    %v125 = vld [vmem:[#allocation2 + $0x144] sm:$0xf]
    %v126 = vld [vmem:[#allocation2 + $0x148] sm:$0xf]
    %v127 = vld [vmem:[#allocation2 + $0x14c] sm:$0xf]
    %v128 = vld [vmem:[#allocation2 + $0x150] sm:$0xf]
    %v129 = vld [vmem:[#allocation2 + $0x154] sm:$0xf]
    %v130 = vld [vmem:[#allocation2 + $0x158] sm:$0xf]
    %v131 = vld [vmem:[#allocation2 + $0x15c] sm:$0xf]
    %v132 = vld [vmem:[#allocation2 + $0x160] sm:$0xf]
    %v133 = vld [vmem:[#allocation2 + $0x164] sm:$0xf]
    %v134 = vld [vmem:[#allocation2 + $0x168] sm:$0xf]
    %v135 = vld [vmem:[#allocation2 + $0x16c] sm:$0xf]
    %v136 = vld [vmem:[#allocation2 + $0x170] sm:$0xf]
    %v137 = vld [vmem:[#allocation2 + $0x174] sm:$0xf]
    %v138 = vld [vmem:[#allocation2 + $0x178] sm:$0xf]
    %v139 = vld [vmem:[#allocation2 + $0x17c] sm:$0xf]
    %v140 = vld [vmem:[#allocation2 + $0x180] sm:$0xf]
    %v141 = vld [vmem:[#allocation2 + $0x184] sm:$0xf]
    %v142 = vld [vmem:[#allocation2 + $0x188] sm:$0xf]
    %v143 = vld [vmem:[#allocation2 + $0x18c] sm:$0xf]
    %v144 = vld [vmem:[#allocation2 + $0x190] sm:$0xf]
    %v145 = vld [vmem:[#allocation2 + $0x194] sm:$0xf]
    %v146 = vld [vmem:[#allocation2 + $0x198] sm:$0xf]
    %v147 = vld [vmem:[#allocation2 + $0x19c] sm:$0xf]
    %v148 = vld [vmem:[#allocation2 + $0x1a0] sm:$0xf]
    %v149 = vld [vmem:[#allocation2 + $0x1a4] sm:$0xf]
    %v150 = vld [vmem:[#allocation2 + $0x1a8] sm:$0xf]
    %v151 = vld [vmem:[#allocation2 + $0x1ac] sm:$0xf]
    %v152 = vld [vmem:[#allocation2 + $0x1b0] sm:$0xf]
    %v153 = vld [vmem:[#allocation2 + $0x1b4] sm:$0xf]
    %v154 = vld [vmem:[#allocation2 + $0x1b8] sm:$0xf]
    %v155 = vld [vmem:[#allocation2 + $0x1bc] sm:$0xf]
    %v156 = vld [vmem:[#allocation2 + $0x1c0] sm:$0xf]
    %v157 = vld [vmem:[#allocation2 + $0x1c4] sm:$0xf]
    %v158 = vld [vmem:[#allocation2 + $0x1c8] sm:$0xf]
    %v159 = vld [vmem:[#allocation2 + $0x1cc] sm:$0xf]
    %v160 = vld [vmem:[#allocation2 + $0x1d0] sm:$0xf]
    %v161 = vld [vmem:[#allocation2 + $0x1d4] sm:$0xf]
    %v162 = vld [vmem:[#allocation2 + $0x1d8] sm:$0xf]
    %v163 = vld [vmem:[#allocation2 + $0x1dc] sm:$0xf]
    %v164 = vld [vmem:[#allocation2 + $0x1e0] sm:$0xf]
    %v165 = vld [vmem:[#allocation2 + $0x1e4] sm:$0xf]
    %v166 = vld [vmem:[#allocation2 + $0x1e8] sm:$0xf]
    %v167 = vld [vmem:[#allocation2 + $0x1ec] sm:$0xf]
    %v168 = vld [vmem:[#allocation2 + $0x1f0] sm:$0xf]
    %v169 = vld [vmem:[#allocation2 + $0x1f4] sm:$0xf]
    %v170 = vld [vmem:[#allocation2 + $0x1f8] sm:$0xf]
    %v171 = vld [vmem:[#allocation2 + $0x1fc] sm:$0xf]
    %v172 = vld [vmem:[%s2] sm:$0x1]
    %v175 = vcombine.high %v42, %v42
    %v177 = vunpack.c.l.s4 1983009808
    %v178 = vunpack.c.0.s8 %v177
    %v179 = vlaneseq
    %v180 = vshrl.u32 %v179, 7
    %v181 = vsub.s32 %v178, %v180
    %v182 = vrot.slane %v42, %v181
    %v184 = vunpack.c.l.s4 1983009808
    %v185 = vunpack.c.0.s8 %v184
    %v186 = vlaneseq
    %v187 = vshrl.u32 %v186, 7
    %v188 = vsub.s32 %v185, %v187
    %v189 = vrot.slane %v175, %v188
    %v190 = vcombine.high %v182, %v182
    %v191 = vcombine.high %v189, %v189
    %v192 = vcombine.high %v43, %v43
    %v194 = vunpack.c.l.s4 1983009808
    %v195 = vunpack.c.0.s8 %v194
    %v196 = vlaneseq
    %v197 = vshrl.u32 %v196, 7
    %v198 = vsub.s32 %v195, %v197
    %v199 = vrot.slane %v43, %v198
    %v201 = vunpack.c.l.s4 1983009808
    %v202 = vunpack.c.0.s8 %v201
    %v203 = vlaneseq
    %v204 = vshrl.u32 %v203, 7
    %v205 = vsub.s32 %v202, %v204
    %v206 = vrot.slane %v192, %v205
    %v207 = vcombine.high %v199, %v199
    %v208 = vcombine.high %v206, %v206
    %v217 = vpack.c.bf16 %v182, %v182
    %v218 = vpack.c.bf16 %v190, %v190
    %v219 = vpack.c.bf16 %v189, %v189
    %v220 = vpack.c.bf16 %v191, %v191
    %v221 = vpack.c.bf16 %v199, %v199
    %v222 = vpack.c.bf16 %v207, %v207
    %v223 = vpack.c.bf16 %v206, %v206
    %v224 = vpack.c.bf16 %v208, %v208
    %v226 = vlaneseq
    %v227 = vshrl.u32 %v226, 7
    %v228 = vsub.s32 0, %v227
    %v229 = vrot.slane %v172, %v228
    %v359 = vunpack.c.l.b16 %v44
    %v360 = vunpack.c.l.b16 %v45
    %v361 = vunpack.c.l.b16 %v46
    %v362 = vunpack.c.l.b16 %v47
    %v363 = vunpack.c.l.b16 %v48
    %v364 = vunpack.c.l.b16 %v49
    %v365 = vunpack.c.l.b16 %v50
    %v366 = vunpack.c.l.b16 %v51
    %v367 = vunpack.c.l.b16 %v52
    %v368 = vunpack.c.l.b16 %v53
    %v369 = vunpack.c.l.b16 %v54
    %v370 = vunpack.c.l.b16 %v55
    %v371 = vunpack.c.l.b16 %v56
    %v372 = vunpack.c.l.b16 %v57
    %v373 = vunpack.c.l.b16 %v58
    %v374 = vunpack.c.l.b16 %v59
    %v375 = vunpack.c.l.b16 %v60
    %v376 = vunpack.c.l.b16 %v61
    %v377 = vunpack.c.l.b16 %v62
    %v378 = vunpack.c.l.b16 %v63
    %v379 = vunpack.c.l.b16 %v64
    %v380 = vunpack.c.l.b16 %v65
    %v381 = vunpack.c.l.b16 %v66
    %v382 = vunpack.c.l.b16 %v67
    %v383 = vunpack.c.l.b16 %v68
    %v384 = vunpack.c.l.b16 %v69
    %v385 = vunpack.c.l.b16 %v70
    %v386 = vunpack.c.l.b16 %v71
    %v387 = vunpack.c.l.b16 %v72
    %v388 = vunpack.c.l.b16 %v73
    %v389 = vunpack.c.l.b16 %v74
    %v390 = vunpack.c.l.b16 %v75
    %v391 = vunpack.c.l.b16 %v76
    %v392 = vunpack.c.l.b16 %v77
    %v393 = vunpack.c.l.b16 %v78
    %v394 = vunpack.c.l.b16 %v79
    %v395 = vunpack.c.l.b16 %v80
    %v396 = vunpack.c.l.b16 %v81
    %v397 = vunpack.c.l.b16 %v82
    %v398 = vunpack.c.l.b16 %v83
    %v399 = vunpack.c.l.b16 %v84
    %v400 = vunpack.c.l.b16 %v85
    %v401 = vunpack.c.l.b16 %v86
    %v402 = vunpack.c.l.b16 %v87
    %v403 = vunpack.c.l.b16 %v88
    %v404 = vunpack.c.l.b16 %v89
    %v405 = vunpack.c.l.b16 %v90
    %v406 = vunpack.c.l.b16 %v91
    %v407 = vunpack.c.l.b16 %v92
    %v408 = vunpack.c.l.b16 %v93
    %v409 = vunpack.c.l.b16 %v94
    %v410 = vunpack.c.l.b16 %v95
    %v411 = vunpack.c.l.b16 %v96
    %v412 = vunpack.c.l.b16 %v97
    %v413 = vunpack.c.l.b16 %v98
    %v414 = vunpack.c.l.b16 %v99
    %v415 = vunpack.c.l.b16 %v100
    %v416 = vunpack.c.l.b16 %v101
    %v417 = vunpack.c.l.b16 %v102
    %v418 = vunpack.c.l.b16 %v103
    %v419 = vunpack.c.l.b16 %v104
    %v420 = vunpack.c.l.b16 %v105
    %v421 = vunpack.c.l.b16 %v106
    %v422 = vunpack.c.l.b16 %v107
    %v423 = vunpack.c.l.b16 %v108
    %v424 = vunpack.c.l.b16 %v109
    %v425 = vunpack.c.l.b16 %v110
    %v426 = vunpack.c.l.b16 %v111
    %v427 = vunpack.c.l.b16 %v112
    %v428 = vunpack.c.l.b16 %v113
    %v429 = vunpack.c.l.b16 %v114
    %v430 = vunpack.c.l.b16 %v115
    %v431 = vunpack.c.l.b16 %v116
    %v432 = vunpack.c.l.b16 %v117
    %v433 = vunpack.c.l.b16 %v118
    %v434 = vunpack.c.l.b16 %v119
    %v435 = vunpack.c.l.b16 %v120
    %v436 = vunpack.c.l.b16 %v121
    %v437 = vunpack.c.l.b16 %v122
    %v438 = vunpack.c.l.b16 %v123
    %v439 = vunpack.c.l.b16 %v124
    %v440 = vunpack.c.l.b16 %v125
    %v441 = vunpack.c.l.b16 %v126
    %v442 = vunpack.c.l.b16 %v127
    %v443 = vunpack.c.l.b16 %v128
    %v444 = vunpack.c.l.b16 %v129
    %v445 = vunpack.c.l.b16 %v130
    %v446 = vunpack.c.l.b16 %v131
    %v447 = vunpack.c.l.b16 %v132
    %v448 = vunpack.c.l.b16 %v133
    %v449 = vunpack.c.l.b16 %v134
    %v450 = vunpack.c.l.b16 %v135
    %v451 = vunpack.c.l.b16 %v136
    %v452 = vunpack.c.l.b16 %v137
    %v453 = vunpack.c.l.b16 %v138
    %v454 = vunpack.c.l.b16 %v139
    %v455 = vunpack.c.l.b16 %v140
    %v456 = vunpack.c.l.b16 %v141
    %v457 = vunpack.c.l.b16 %v142
    %v458 = vunpack.c.l.b16 %v143
    %v459 = vunpack.c.l.b16 %v144
    %v460 = vunpack.c.l.b16 %v145
    %v461 = vunpack.c.l.b16 %v146
    %v462 = vunpack.c.l.b16 %v147
    %v463 = vunpack.c.l.b16 %v148
    %v464 = vunpack.c.l.b16 %v149
    %v465 = vunpack.c.l.b16 %v150
    %v466 = vunpack.c.l.b16 %v151
    %v467 = vunpack.c.l.b16 %v152
    %v468 = vunpack.c.l.b16 %v153
    %v469 = vunpack.c.l.b16 %v154
    %v470 = vunpack.c.l.b16 %v155
    %v471 = vunpack.c.l.b16 %v156
    %v472 = vunpack.c.l.b16 %v157
    %v473 = vunpack.c.l.b16 %v158
    %v474 = vunpack.c.l.b16 %v159
    %v475 = vunpack.c.l.b16 %v160
    %v476 = vunpack.c.l.b16 %v161
    %v477 = vunpack.c.l.b16 %v162
    %v478 = vunpack.c.l.b16 %v163
    %v479 = vunpack.c.l.b16 %v164
    %v480 = vunpack.c.l.b16 %v165
    %v481 = vunpack.c.l.b16 %v166
    %v482 = vunpack.c.l.b16 %v167
    %v483 = vunpack.c.l.b16 %v168
    %v484 = vunpack.c.l.b16 %v169
    %v485 = vunpack.c.l.b16 %v170
    %v486 = vunpack.c.l.b16 %v171
    %v487 = vpack.c.b16 %v360, %v359
    %v488 = vpack.c.b16 %v362, %v361
    %v489 = vpack.c.b16 %v364, %v363
    %v490 = vpack.c.b16 %v366, %v365
    %v491 = vpack.c.b16 %v368, %v367
    %v492 = vpack.c.b16 %v370, %v369
    %v493 = vpack.c.b16 %v372, %v371
    %v494 = vpack.c.b16 %v374, %v373
    %v495 = vpack.c.b16 %v376, %v375
    %v496 = vpack.c.b16 %v378, %v377
    %v497 = vpack.c.b16 %v380, %v379
    %v498 = vpack.c.b16 %v382, %v381
    %v499 = vpack.c.b16 %v384, %v383
    %v500 = vpack.c.b16 %v386, %v385
    %v501 = vpack.c.b16 %v388, %v387
    %v502 = vpack.c.b16 %v390, %v389
    %v503 = vpack.c.b16 %v392, %v391
    %v504 = vpack.c.b16 %v394, %v393
    %v505 = vpack.c.b16 %v396, %v395
    %v506 = vpack.c.b16 %v398, %v397
    %v507 = vpack.c.b16 %v400, %v399
    %v508 = vpack.c.b16 %v402, %v401
    %v509 = vpack.c.b16 %v404, %v403
    %v510 = vpack.c.b16 %v406, %v405
    %v511 = vpack.c.b16 %v408, %v407
    %v512 = vpack.c.b16 %v410, %v409
    %v513 = vpack.c.b16 %v412, %v411
    %v514 = vpack.c.b16 %v414, %v413
    %v515 = vpack.c.b16 %v416, %v415
    %v516 = vpack.c.b16 %v418, %v417
    %v517 = vpack.c.b16 %v420, %v419
    %v518 = vpack.c.b16 %v422, %v421
    %v519 = vpack.c.b16 %v424, %v423
    %v520 = vpack.c.b16 %v426, %v425
    %v521 = vpack.c.b16 %v428, %v427
    %v522 = vpack.c.b16 %v430, %v429
    %v523 = vpack.c.b16 %v432, %v431
    %v524 = vpack.c.b16 %v434, %v433
    %v525 = vpack.c.b16 %v436, %v435
    %v526 = vpack.c.b16 %v438, %v437
    %v527 = vpack.c.b16 %v440, %v439
    %v528 = vpack.c.b16 %v442, %v441
    %v529 = vpack.c.b16 %v444, %v443
    %v530 = vpack.c.b16 %v446, %v445
    %v531 = vpack.c.b16 %v448, %v447
    %v532 = vpack.c.b16 %v450, %v449
    %v533 = vpack.c.b16 %v452, %v451
    %v534 = vpack.c.b16 %v454, %v453
    %v535 = vpack.c.b16 %v456, %v455
    %v536 = vpack.c.b16 %v458, %v457
    %v537 = vpack.c.b16 %v460, %v459
    %v538 = vpack.c.b16 %v462, %v461
    %v539 = vpack.c.b16 %v464, %v463
    %v540 = vpack.c.b16 %v466, %v465
    %v541 = vpack.c.b16 %v468, %v467
    %v542 = vpack.c.b16 %v470, %v469
    %v543 = vpack.c.b16 %v472, %v471
    %v544 = vpack.c.b16 %v474, %v473
    %v545 = vpack.c.b16 %v476, %v475
    %v546 = vpack.c.b16 %v478, %v477
    %v547 = vpack.c.b16 %v480, %v479
    %v548 = vpack.c.b16 %v482, %v481
    %v549 = vpack.c.b16 %v484, %v483
    %v550 = vpack.c.b16 %v486, %v485
    %615 = vmatprep.subr.bf16.mxu0 0
    %616 = vmatpush1.bf16.msra.mxu0 %v487
    %617 = vmatprep.subr.bf16.mxu0 0
    %618 = vmatpush1.bf16.msra.mxu0 %v488
    %619 = vmatprep.subr.bf16.mxu0 0
    %620 = vmatpush1.bf16.msra.mxu0 %v489
    %621 = vmatprep.subr.bf16.mxu0 0
    %622 = vmatpush1.bf16.msra.mxu0 %v490
    %623 = vmatprep.subr.bf16.mxu0 0
    %624 = vmatpush1.bf16.msra.mxu0 %v491
    %625 = vmatprep.subr.bf16.mxu0 0
    %626 = vmatpush1.bf16.msra.mxu0 %v492
    %627 = vmatprep.subr.bf16.mxu0 0
    %628 = vmatpush1.bf16.msra.mxu0 %v493
    %629 = vmatprep.subr.bf16.mxu0 0
    %630 = vmatpush1.bf16.msra.mxu0 %v494
    %631 = vmatprep.subr.bf16.mxu0 0
    %632 = vmatpush1.bf16.msra.mxu0 %v495
    %633 = vmatprep.subr.bf16.mxu0 0
    %634 = vmatpush1.bf16.msra.mxu0 %v496
    %635 = vmatprep.subr.bf16.mxu0 0
    %636 = vmatpush1.bf16.msra.mxu0 %v497
    %637 = vmatprep.subr.bf16.mxu0 0
    %638 = vmatpush1.bf16.msra.mxu0 %v498
    %639 = vmatprep.subr.bf16.mxu0 0
    %640 = vmatpush1.bf16.msra.mxu0 %v499
    %641 = vmatprep.subr.bf16.mxu0 0
    %642 = vmatpush1.bf16.msra.mxu0 %v500
    %643 = vmatprep.subr.bf16.mxu0 0
    %644 = vmatpush1.bf16.msra.mxu0 %v501
    %645 = vmatprep.subr.bf16.mxu0 0
    %646 = vmatpush1.bf16.msra.mxu0 %v502
    %647 = vmatprep.mubr.bf16.mxu0 %v218
    %648 = vmatmul.mubr.bf16.gmra.mrb[0].mxu0 %v217
    %v649 = vpop.f32.mrb[0].mxu0
    %v650 = vadd.f32 %v229, %v649
    %v651 = vpop.f32.mrb[0].mxu0
    %v652 = vpop.f32.mrb[0].mxu0
    %v653 = vpop.f32.mrb[0].mxu0
    %654 = vdwg.mxu0
    %655 = vmatprep.subr.bf16.mxu0 0
    %656 = vmatpush1.bf16.msra.mxu0 %v503
    %657 = vmatprep.subr.bf16.mxu0 0
    %658 = vmatpush1.bf16.msra.mxu0 %v504
    %659 = vmatprep.subr.bf16.mxu0 0
    %660 = vmatpush1.bf16.msra.mxu0 %v505
    %661 = vmatprep.subr.bf16.mxu0 0
    %662 = vmatpush1.bf16.msra.mxu0 %v506
    %663 = vmatprep.subr.bf16.mxu0 0
    %664 = vmatpush1.bf16.msra.mxu0 %v507
    %665 = vmatprep.subr.bf16.mxu0 0
    %666 = vmatpush1.bf16.msra.mxu0 %v508
    %667 = vmatprep.subr.bf16.mxu0 0
    %668 = vmatpush1.bf16.msra.mxu0 %v509
    %669 = vmatprep.subr.bf16.mxu0 0
    %670 = vmatpush1.bf16.msra.mxu0 %v510
    %671 = vmatprep.subr.bf16.mxu0 0
    %672 = vmatpush1.bf16.msra.mxu0 %v511
    %673 = vmatprep.subr.bf16.mxu0 0
    %674 = vmatpush1.bf16.msra.mxu0 %v512
    %675 = vmatprep.subr.bf16.mxu0 0
    %676 = vmatpush1.bf16.msra.mxu0 %v513
    %677 = vmatprep.subr.bf16.mxu0 0
    %678 = vmatpush1.bf16.msra.mxu0 %v514
    %679 = vmatprep.subr.bf16.mxu0 0
    %680 = vmatpush1.bf16.msra.mxu0 %v515
    %681 = vmatprep.subr.bf16.mxu0 0
    %682 = vmatpush1.bf16.msra.mxu0 %v516
    %683 = vmatprep.subr.bf16.mxu0 0
    %684 = vmatpush1.bf16.msra.mxu0 %v517
    %685 = vmatprep.subr.bf16.mxu0 0
    %686 = vmatpush1.bf16.msra.mxu0 %v518
    %687 = vmatprep.mubr.bf16.mxu0 %v220
    %688 = vmatmul.mubr.bf16.gmra.mrb[0].mxu0 %v219
    %v689 = vpop.f32.mrb[0].mxu0
    %v690 = vadd.f32 %v650, %v689
    %v691 = vpop.f32.mrb[0].mxu0
    %v692 = vpop.f32.mrb[0].mxu0
    %v693 = vpop.f32.mrb[0].mxu0
    %694 = vdwg.mxu0
    %695 = vmatprep.subr.bf16.mxu0 0
    %696 = vmatpush1.bf16.msra.mxu0 %v519
    %697 = vmatprep.subr.bf16.mxu0 0
    %698 = vmatpush1.bf16.msra.mxu0 %v520
    %699 = vmatprep.subr.bf16.mxu0 0
    %700 = vmatpush1.bf16.msra.mxu0 %v521
    %701 = vmatprep.subr.bf16.mxu0 0
    %702 = vmatpush1.bf16.msra.mxu0 %v522
    %703 = vmatprep.subr.bf16.mxu0 0
    %704 = vmatpush1.bf16.msra.mxu0 %v523
    %705 = vmatprep.subr.bf16.mxu0 0
    %706 = vmatpush1.bf16.msra.mxu0 %v524
    %707 = vmatprep.subr.bf16.mxu0 0
    %708 = vmatpush1.bf16.msra.mxu0 %v525
    %709 = vmatprep.subr.bf16.mxu0 0
    %710 = vmatpush1.bf16.msra.mxu0 %v526
    %711 = vmatprep.subr.bf16.mxu0 0
    %712 = vmatpush1.bf16.msra.mxu0 %v527
    %713 = vmatprep.subr.bf16.mxu0 0
    %714 = vmatpush1.bf16.msra.mxu0 %v528
    %715 = vmatprep.subr.bf16.mxu0 0
    %716 = vmatpush1.bf16.msra.mxu0 %v529
    %717 = vmatprep.subr.bf16.mxu0 0
    %718 = vmatpush1.bf16.msra.mxu0 %v530
    %719 = vmatprep.subr.bf16.mxu0 0
    %720 = vmatpush1.bf16.msra.mxu0 %v531
    %721 = vmatprep.subr.bf16.mxu0 0
    %722 = vmatpush1.bf16.msra.mxu0 %v532
    %723 = vmatprep.subr.bf16.mxu0 0
    %724 = vmatpush1.bf16.msra.mxu0 %v533
    %725 = vmatprep.subr.bf16.mxu0 0
    %726 = vmatpush1.bf16.msra.mxu0 %v534
    %727 = vmatprep.mubr.bf16.mxu0 %v222
    %728 = vmatmul.mubr.bf16.gmra.mrb[0].mxu0 %v221
    %v729 = vpop.f32.mrb[0].mxu0
    %v730 = vadd.f32 %v690, %v729
    %v731 = vpop.f32.mrb[0].mxu0
    %v732 = vpop.f32.mrb[0].mxu0
    %v733 = vpop.f32.mrb[0].mxu0
    %734 = vdwg.mxu0
    %735 = vmatprep.subr.bf16.mxu0 0
    %736 = vmatpush1.bf16.msra.mxu0 %v535
    %737 = vmatprep.subr.bf16.mxu0 0
    %738 = vmatpush1.bf16.msra.mxu0 %v536
    %739 = vmatprep.subr.bf16.mxu0 0
    %740 = vmatpush1.bf16.msra.mxu0 %v537
    %741 = vmatprep.subr.bf16.mxu0 0
    %742 = vmatpush1.bf16.msra.mxu0 %v538
    %743 = vmatprep.subr.bf16.mxu0 0
    %744 = vmatpush1.bf16.msra.mxu0 %v539
    %745 = vmatprep.subr.bf16.mxu0 0
    %746 = vmatpush1.bf16.msra.mxu0 %v540
    %747 = vmatprep.subr.bf16.mxu0 0
    %748 = vmatpush1.bf16.msra.mxu0 %v541
    %749 = vmatprep.subr.bf16.mxu0 0
    %750 = vmatpush1.bf16.msra.mxu0 %v542
    %751 = vmatprep.subr.bf16.mxu0 0
    %752 = vmatpush1.bf16.msra.mxu0 %v543
    %753 = vmatprep.subr.bf16.mxu0 0
    %754 = vmatpush1.bf16.msra.mxu0 %v544
    %755 = vmatprep.subr.bf16.mxu0 0
    %756 = vmatpush1.bf16.msra.mxu0 %v545
    %757 = vmatprep.subr.bf16.mxu0 0
    %758 = vmatpush1.bf16.msra.mxu0 %v546
    %759 = vmatprep.subr.bf16.mxu0 0
    %760 = vmatpush1.bf16.msra.mxu0 %v547
    %761 = vmatprep.subr.bf16.mxu0 0
    %762 = vmatpush1.bf16.msra.mxu0 %v548
    %763 = vmatprep.subr.bf16.mxu0 0
    %764 = vmatpush1.bf16.msra.mxu0 %v549
    %765 = vmatprep.subr.bf16.mxu0 0
    %766 = vmatpush1.bf16.msra.mxu0 %v550
    %767 = vmatprep.mubr.bf16.mxu0 %v224
    %768 = vmatmul.mubr.bf16.gmra.mrb[0].mxu0 %v223
    %v769 = vpop.f32.mrb[0].mxu0
    %v770 = vadd.f32 %v730, %v769
    %v771 = vpop.f32.mrb[0].mxu0
    %v772 = vpop.f32.mrb[0].mxu0
    %v773 = vpop.f32.mrb[0].mxu0
    %774 = vdwg.mxu0
    %v775 = vmax.f32 %v770, 0.0
    %v776 = vld [vmem:[%s3] sm:$0xf]
    %v777 = vld [vmem:[%s3 + $0x4] sm:$0xf]
    %v778 = vld [vmem:[%s3 + $0x8] sm:$0xf]
    %v779 = vld [vmem:[%s3 + $0xc] sm:$0xf]
    %v780 = vld [vmem:[%s3 + $0x10] sm:$0xf]
    %v781 = vld [vmem:[%s3 + $0x14] sm:$0xf]
    %v782 = vld [vmem:[%s3 + $0x18] sm:$0xf]
    %v783 = vld [vmem:[%s3 + $0x1c] sm:$0xf]
    %v784 = vld [vmem:[%s3 + $0x20] sm:$0xf]
    %v785 = vld [vmem:[%s3 + $0x24] sm:$0xf]
    %v786 = vld [vmem:[%s3 + $0x28] sm:$0xf]
    %v787 = vld [vmem:[%s3 + $0x2c] sm:$0xf]
    %v788 = vld [vmem:[%s3 + $0x30] sm:$0xf]
    %v789 = vld [vmem:[%s3 + $0x34] sm:$0xf]
    %v790 = vld [vmem:[%s3 + $0x38] sm:$0xf]
    %v791 = vld [vmem:[%s3 + $0x3c] sm:$0xf]
    %v792 = vld [vmem:[%s4] sm:$0x1]
    %v793 = vpack.c.bf16 %v775, %v775
    %v795 = vlaneseq
    %v796 = vshrl.u32 %v795, 7
    %v797 = vsub.s32 0, %v796
    %v798 = vrot.slane %v792, %v797
    %v816 = vunpack.c.l.b16 %v776
    %v817 = vunpack.c.l.b16 %v777
    %v818 = vunpack.c.l.b16 %v778
    %v819 = vunpack.c.l.b16 %v779
    %v820 = vunpack.c.l.b16 %v780
    %v821 = vunpack.c.l.b16 %v781
    %v822 = vunpack.c.l.b16 %v782
    %v823 = vunpack.c.l.b16 %v783
    %v824 = vunpack.c.l.b16 %v784
    %v825 = vunpack.c.l.b16 %v785
    %v826 = vunpack.c.l.b16 %v786
    %v827 = vunpack.c.l.b16 %v787
    %v828 = vunpack.c.l.b16 %v788
    %v829 = vunpack.c.l.b16 %v789
    %v830 = vunpack.c.l.b16 %v790
    %v831 = vunpack.c.l.b16 %v791
    %v832 = vpack.c.b16 %v817, %v816
    %v833 = vpack.c.b16 %v819, %v818
    %v834 = vpack.c.b16 %v821, %v820
    %v835 = vpack.c.b16 %v823, %v822
    %v836 = vpack.c.b16 %v825, %v824
    %v837 = vpack.c.b16 %v827, %v826
    %v838 = vpack.c.b16 %v829, %v828
    %v839 = vpack.c.b16 %v831, %v830
    %848 = vmatprep.subr.bf16.mxu0 0
    %849 = vmatpush1.bf16.msra.mxu0 %v832
    %850 = vmatprep.subr.bf16.mxu0 0
    %851 = vmatpush1.bf16.msra.mxu0 %v833
    %852 = vmatprep.subr.bf16.mxu0 0
    %853 = vmatpush1.bf16.msra.mxu0 %v834
    %854 = vmatprep.subr.bf16.mxu0 0
    %855 = vmatpush1.bf16.msra.mxu0 %v835
    %856 = vmatprep.subr.bf16.mxu0 0
    %857 = vmatpush1.bf16.msra.mxu0 %v836
    %858 = vmatprep.subr.bf16.mxu0 0
    %859 = vmatpush1.bf16.msra.mxu0 %v837
    %860 = vmatprep.subr.bf16.mxu0 0
    %861 = vmatpush1.bf16.msra.mxu0 %v838
    %862 = vmatprep.subr.bf16.mxu0 0
    %863 = vmatpush1.bf16.msra.mxu0 %v839
    %864 = vmatprep.subr.bf16.mxu0 0
    %865 = vmatpush1.bf16.msra.mxu0 0
    %866 = vmatprep.subr.bf16.mxu0 0
    %867 = vmatpush1.bf16.msra.mxu0 0
    %868 = vmatprep.subr.bf16.mxu0 0
    %869 = vmatpush1.bf16.msra.mxu0 0
    %870 = vmatprep.subr.bf16.mxu0 0
    %871 = vmatpush1.bf16.msra.mxu0 0
    %872 = vmatprep.subr.bf16.mxu0 0
    %873 = vmatpush1.bf16.msra.mxu0 0
    %874 = vmatprep.subr.bf16.mxu0 0
    %875 = vmatpush1.bf16.msra.mxu0 0
    %876 = vmatprep.subr.bf16.mxu0 0
    %877 = vmatpush1.bf16.msra.mxu0 0
    %878 = vmatprep.subr.bf16.mxu0 0
    %879 = vmatpush1.bf16.msra.mxu0 0
    %880 = vmatprep.mubr.bf16.mxu0 0
    %881 = vmatmul.mubr.bf16.gmra.mrb[0].mxu0 %v793
    %v882 = vpop.f32.mrb[0].mxu0
    %v883 = vadd.f32 %v798, %v882
    %v884 = vpop.f32.mrb[0].mxu0
    %v885 = vpop.f32.mrb[0].mxu0
    %v886 = vpop.f32.mrb[0].mxu0
    %887 = vdwg.mxu0
    %v888 = vmax.f32 %v883, 0.0
    %v889 = vld [vmem:[%s5] sm:$0xf]
    %v890 = vld [vmem:[%s5 + $0x4] sm:$0xf]
    %v891 = vld [vmem:[%s5 + $0x8] sm:$0xf]
    %v892 = vld [vmem:[%s5 + $0xc] sm:$0xf]
    %v893 = vld [vmem:[%s5 + $0x10] sm:$0xf]
    %v894 = vld [vmem:[%s5 + $0x14] sm:$0xf]
    %v895 = vld [vmem:[%s5 + $0x18] sm:$0xf]
    %v896 = vld [vmem:[%s5 + $0x1c] sm:$0xf]
    %v897 = vld [vmem:[%s6] sm:$0x1]
    %v898 = vpack.c.bf16 %v888, %v888
    %v900 = vlaneseq
    %v901 = vshrl.u32 %v900, 7
    %v902 = vsub.s32 0, %v901
    %v903 = vrot.slane %v897, %v902
    %v913 = vunpack.c.l.b16 %v889
    %v914 = vunpack.c.l.b16 %v890
    %v915 = vunpack.c.l.b16 %v891
    %v916 = vunpack.c.l.b16 %v892
    %v917 = vunpack.c.l.b16 %v893
    %v918 = vunpack.c.l.b16 %v894
    %v919 = vunpack.c.l.b16 %v895
    %v920 = vunpack.c.l.b16 %v896
    %v921 = vpack.c.b16 %v914, %v913
    %v922 = vpack.c.b16 %v916, %v915
    %v923 = vpack.c.b16 %v918, %v917
    %v924 = vpack.c.b16 %v920, %v919
    %vm929 = vcmask 523264
    %v931 = vsel %vm929, %v898, 0
    %933 = vmatprep.subr.bf16.mxu0 0
    %934 = vmatpush1.bf16.msra.mxu0 %v921
    %935 = vmatprep.subr.bf16.mxu0 0
    %936 = vmatpush1.bf16.msra.mxu0 %v922
    %937 = vmatprep.subr.bf16.mxu0 0
    %938 = vmatpush1.bf16.msra.mxu0 %v923
    %939 = vmatprep.subr.bf16.mxu0 0
    %940 = vmatpush1.bf16.msra.mxu0 %v924
    %941 = vmatprep.subr.bf16.mxu0 0
    %942 = vmatpush1.bf16.msra.mxu0 0
    %943 = vmatprep.subr.bf16.mxu0 0
    %944 = vmatpush1.bf16.msra.mxu0 0
    %945 = vmatprep.subr.bf16.mxu0 0
    %946 = vmatpush1.bf16.msra.mxu0 0
    %947 = vmatprep.subr.bf16.mxu0 0
    %948 = vmatpush1.bf16.msra.mxu0 0
    %949 = vmatprep.subr.bf16.mxu0 0
    %950 = vmatpush1.bf16.msra.mxu0 0
    %951 = vmatprep.subr.bf16.mxu0 0
    %952 = vmatpush1.bf16.msra.mxu0 0
    %953 = vmatprep.subr.bf16.mxu0 0
    %954 = vmatpush1.bf16.msra.mxu0 0
    %955 = vmatprep.subr.bf16.mxu0 0
    %956 = vmatpush1.bf16.msra.mxu0 0
    %957 = vmatprep.subr.bf16.mxu0 0
    %958 = vmatpush1.bf16.msra.mxu0 0
    %959 = vmatprep.subr.bf16.mxu0 0
    %960 = vmatpush1.bf16.msra.mxu0 0
    %961 = vmatprep.subr.bf16.mxu0 0
    %962 = vmatpush1.bf16.msra.mxu0 0
    %963 = vmatprep.subr.bf16.mxu0 0
    %964 = vmatpush1.bf16.msra.mxu0 0
    %965 = vmatprep.mubr.bf16.mxu0 0
    %966 = vmatmul.mubr.bf16.gmra.mrb[0].mxu0 %v931
    %v967 = vpop.f32.mrb[0].mxu0
    %v968 = vadd.f32 %v903, %v967
    %v969 = vpop.f32.mrb[0].mxu0
    %v970 = vpop.f32.mrb[0].mxu0
    %v971 = vpop.f32.mrb[0].mxu0
    %972 = vdwg.mxu0
    %vm973 = vcmask 123904
    %974 = vst.msk [vmem:[#allocation5] sm:$0x3] %vm973, %v968
    // Predicated region
    $region34: #{_lambda_.1} parent=1 // pred_check
      _
    $region35: #{_lambda_.1} parent=1 // pred_check_branch
      %976 = sbr.rel (0) target = $region37
    $region36: #{_lambda_.1} parent=1 // pred_region
      %s978 = ssub.s32 32, 32
      %979 = vsyncadd [#allocation4], %s978
      %s981 = sshll.u32 [#allocation5], 4
      %s982 = int_to_ptr.vmem [resolvable:$true] %s981
      %984 = dma.vmem_to_hbm [thread:$0]  %s982, 32, %s7, [#allocation4]
    $region37: #{_lambda_.1} parent=1 // pred_fallthru
      _
    // Predicated region
    $region38: #{_lambda_.1} parent=1 // pred_check
      _
    $region39: #{_lambda_.1} parent=1 // pred_check_branch
      %986 = sbr.rel (0) target = $region41
    $region40: #{_lambda_.1} parent=1 // pred_region
      %987 = dma.done [#allocation4], 32
    $region41: #{_lambda_.1} parent=1 // pred_fallthru
      _
    %988 = vsyncpa [#allocation3], 1
    %989 = vsyncpa [#allocation4], 1

</llo_original>
